<compile_context>
chip_gen: v5e
topology: v5e:2x2
jax: 0.10.0
libtpu: 0.0.40
codegen_flags: <defaults>
</compile_context>

<pallas_src>
import math

import jax
import jax.numpy as jnp
from jax.experimental import pallas as pl
from jax.experimental.pallas import tpu as pltpu

HIDDEN = 1024        # hard-coded in the PyTorch module
HALF = HIDDEN // 2   # per-TensorCore slice of layer-1 output columns
LN_EPS = 1e-5        # nn.LayerNorm default eps


# ---------------------------------------------------------------------------
# Small helpers
# ---------------------------------------------------------------------------
def _ceil_to(x, m):
    return ((x + m - 1) // m) * m


def _nbytes(a):
    return int(math.prod(a.shape)) * a.dtype.itemsize


def _vmem_capacity():
    try:
        return int(pltpu.get_tpu_info().vmem_capacity_bytes)
    except Exception:
        return 64 << 20


def _vmem_limit_bytes():
    # Fit within the per-generation physical VMEM (64 MiB v7x, 128 MiB v5e/v6e),
    # leaving headroom; the kernels stay well under this.
    return int(min(96 << 20, (_vmem_capacity() * 3) // 4))


def _default_max_stream_tile():
    # Cap the streamed-weight tile so (tile x 2 buffers + residents) fits the
    # generation's VMEM: ~4096 lanes on v7x (64 MiB), ~8192 on v5e/v6e (128 MiB).
    return 8192 if _vmem_capacity() >= (100 << 20) else 4096


def _pick_tiling(dim, max_tile):
    """Pick (tile, padded_dim): minimize padded bytes, then grid steps.

    tile is a multiple of 128, tile <= max_tile, padded_dim = n_tiles * tile.
    """
    d128 = _ceil_to(dim, 128)
    max_tile = max(128, (max_tile // 128) * 128)
    best_key, best = None, None
    for n_tiles in range(1, d128 // 128 + 1):
        tile = _ceil_to(-(-d128 // n_tiles), 128)
        if tile > max_tile:
            continue
        padded = n_tiles * tile
        key = (padded, n_tiles)          # fewest padded bytes, then fewest steps
        if best_key is None or key < best_key:
            best_key, best = key, (tile, padded)
    return best


# ---------------------------------------------------------------------------
# In-kernel building blocks
# ---------------------------------------------------------------------------
def _layernorm(h, gamma, beta):
    mean = jnp.mean(h, axis=-1, keepdims=True)
    var = jnp.mean((h - mean) ** 2, axis=-1, keepdims=True)
    return (h - mean) * jax.lax.rsqrt(var + LN_EPS) * gamma + beta


def _trunk_matmul_kernel(x_ref, w1_ref, h1_ref, acc_ref):
    """One (half, K) step of x @ w1, accumulated over K in f32 VMEM scratch.

    Grid = (2, nk): leading "parallel" axis over the two 512-col halves of w1
    (shards the dominant w1 HBM stream across v7x's two TensorCores), trailing
    "arbitrary" K-reduction axis.
    """
    @pl.when(pl.program_id(1) == 0)
    def _():
        acc_ref[...] = jnp.zeros_like(acc_ref)

    acc_ref[...] += jnp.dot(x_ref[...], w1_ref[...],
                            preferred_element_type=jnp.float32)

    @pl.when(pl.program_id(1) == pl.num_programs(1) - 1)
    def _():
        h1_ref[...] = acc_ref[...]


def _finish_trunk(h1, b1, g1, be1, w2, b2, g2, be2, w3, b3, g3, be3):
    """Bias + LN + ReLU for layer1, then layers 2/3 (bf16 weights, f32 math)."""
    h = h1 + b1[...]
    h = jnp.maximum(_layernorm(h, g1[...], be1[...]), 0.0)
    h = jnp.dot(h.astype(w2.dtype), w2[...],
                preferred_element_type=jnp.float32) + b2[...]
    h = jnp.maximum(_layernorm(h, g2[...], be2[...]), 0.0)
    h = jnp.dot(h.astype(w3.dtype), w3[...],
                preferred_element_type=jnp.float32) + b3[...]
    h = jnp.maximum(_layernorm(h, g3[...], be3[...]), 0.0)
    return h


def _trunk_epilogue_h_kernel(h1_ref, b1, g1, be1, w2, b2, g2, be2,
                             w3, b3, g3, be3, h_ref):
    h_ref[...] = _finish_trunk(h1_ref[...], b1, g1, be1,
                               w2, b2, g2, be2, w3, b3, g3, be3)


def _trunk_epilogue_cls_kernel(h1_ref, b1, g1, be1, w2, b2, g2, be2,
                               w3, b3, g3, be3, wc, bc, out_ref):
    h = _finish_trunk(h1_ref[...], b1, g1, be1,
                      w2, b2, g2, be2, w3, b3, g3, be3)
    out_ref[...] = jnp.dot(h.astype(wc.dtype), wc[...],
                           preferred_element_type=jnp.float32) + bc[...]


def _query_logits_kernel(h_ref, wq_ref, bq_ref, logits_ref):
    """One N-tile of the querier head: h @ wq_tile + bq_tile (no masking here;
    the mask is applied in the small select kernel, so nothing extra is streamed
    through this HBM-bandwidth-bound loop)."""
    logits_ref[...] = jnp.dot(h_ref[...].astype(wq_ref.dtype), wq_ref[...],
                              preferred_element_type=jnp.float32) + bq_ref[...]


def _make_select_kernel(tau, n_queries, has_mask):
    """Mask + softmax(./tau) + straight-through hardargmax over the full row."""
    inv_tau = 1.0 / float(tau)

    def kernel(*refs):
        if has_mask:
            logits_ref, mask_ref, out_ref = refs
        else:
            logits_ref, out_ref = refs
        logits = logits_ref[...]
        col = jax.lax.broadcasted_iota(jnp.int32, logits.shape, 1)
        # Padded query columns (zero wq/bq -> logit 0) can never be selected.
        logits = jnp.where(col >= n_queries, -jnp.inf, logits)
        if has_mask:
            # masked_fill_(mask == 1, -inf), faithful to the PyTorch `mask == 1`.
            logits = jnp.where(mask_ref[...] == 1.0, -jnp.inf, logits)

        z = logits * inv_tau
        row_max = jnp.max(z, axis=-1, keepdims=True)
        e = jnp.exp(z - row_max)
        q = e * pl.reciprocal(jnp.sum(e, axis=-1, keepdims=True), approx=True)

        # hardargmax(logits): one-hot of the first argmax.  argmax(z)==argmax(logits)
        # for tau > 0, so the softmax row-max reduction is reused.
        big = jnp.int32(logits.shape[-1])
        first_idx = jnp.min(jnp.where(z == row_max, col, big),
                            axis=-1, keepdims=True)
        hard = (col == first_idx).astype(q.dtype)

        # TODO(synk): .detach() only affects autograd; the forward value of
        # (hard - q).detach() + q is reproduced here.  Numerically == hard; the
        # softmax is kept (it is tiny) so a fully-masked row propagates NaN
        # exactly like PyTorch.  Training would need a jax.custom_vjp.
        out_ref[...] = (hard - q) + q

    return kernel


# ---------------------------------------------------------------------------
# Parameter init (mimics PyTorch nn.Linear defaults) and one-time packing
# ---------------------------------------------------------------------------
def init_params(key, input_dim, n_queries, n_classes):
    def linear(k, fan_in, fan_out):
        kw, kb = jax.random.split(k)
        bound = 1.0 / (fan_in ** 0.5)
        w = jax.random.uniform(kw, (fan_in, fan_out), jnp.float32, -bound, bound)
        b = jax.random.uniform(kb, (1, fan_out), jnp.float32, -bound, bound)
        return w, b

    k1, k2, k3, kq, kc = jax.random.split(key, 5)
    p = {}
    p["w1"], p["b1"] = linear(k1, input_dim, HIDDEN)
    p["w2"], p["b2"] = linear(k2, HIDDEN, HIDDEN)
    p["w3"], p["b3"] = linear(k3, HIDDEN, HIDDEN)
    for i in (1, 2, 3):
        p[f"g{i}"] = jnp.ones((1, HIDDEN), jnp.float32)      # LayerNorm gamma
        p[f"beta{i}"] = jnp.zeros((1, HIDDEN), jnp.float32)  # LayerNorm beta
    p["wq"], p["bq"] = linear(kq, HIDDEN, n_queries)
    p["wc"], p["bc"] = linear(kc, HIDDEN, n_classes)
    return p


def pack_params(params, *, max_stream_tile=None):
    """One-time packing: minimal 128-aligned padding of K/N, weights cast bf16."""
    input_dim = params["w1"].shape[0]
    n_queries = params["wq"].shape[1]
    n_classes = params["wc"].shape[1]
    if max_stream_tile is None:
        max_stream_tile = _default_max_stream_tile()
    tk, k_pad = _pick_tiling(input_dim, max_stream_tile)
    tn, n_pad = _pick_tiling(n_queries, max_stream_tile)
    nc_pad = _ceil_to(n_classes, 128)

    packed = dict(input_dim=input_dim, n_queries=n_queries, n_classes=n_classes,
                  tk=tk, tn=tn, k_pad=k_pad, n_pad=n_pad, nc_pad=nc_pad)
    packed["w1"] = jnp.pad(params["w1"],
                           ((0, k_pad - input_dim), (0, 0))).astype(jnp.bfloat16)
    packed["w2"] = params["w2"].astype(jnp.bfloat16)
    packed["w3"] = params["w3"].astype(jnp.bfloat16)
    packed["wq"] = jnp.pad(params["wq"],
                           ((0, 0), (0, n_pad - n_queries))).astype(jnp.bfloat16)
    packed["wc"] = jnp.pad(params["wc"],
                           ((0, 0), (0, nc_pad - n_classes))).astype(jnp.bfloat16)
    packed["bq"] = jnp.pad(params["bq"], ((0, 0), (0, n_pad - n_queries)))
    packed["bc"] = jnp.pad(params["bc"], ((0, 0), (0, nc_pad - n_classes)))
    for name in ("b1", "b2", "b3", "g1", "g2", "g3", "beta1", "beta2", "beta3"):
        packed[name] = params[name].astype(jnp.float32)
    return packed


# ---------------------------------------------------------------------------
# Forward wrapper
# ---------------------------------------------------------------------------
def fully_connected_shared_forward(mode, x, packed, mask=None, tau=1.0):
    B = x.shape[0]
    input_dim = packed["input_dim"]
    n_queries = packed["n_queries"]
    n_classes = packed["n_classes"]
    assert x.shape[1] == input_dim
    tk, tn = packed["tk"], packed["tn"]
    k_pad, n_pad, nc_pad = packed["k_pad"], packed["n_pad"], packed["nc_pad"]
    # bf16 packs two rows per sublane -> pad batch to 16 rows for clean layout.
    b_pad = max(16, _ceil_to(B, 16))

    # Pad batch/features, cast activations to bf16 (MXU-native LHS).
    x_p = jnp.pad(x.astype(jnp.bfloat16),
                  ((0, b_pad - B), (0, k_pad - input_dim)))

    vmem_limit = _vmem_limit_bytes()
    nk = k_pad // tk

    def resident(a):
        return pl.BlockSpec(a.shape, lambda i: (0,) * a.ndim)

    # ---- 1) layer-1 matmul: h1 = x @ w1, halves parallel / K reduction ------
    h1 = pl.pallas_call(
        _trunk_matmul_kernel,
        grid=(2, nk),
        in_specs=[pl.BlockSpec((b_pad, tk), lambda h, k: (0, k)),   # x K-tiles
                  pl.BlockSpec((tk, HALF), lambda h, k: (k, h))],   # w1 (K, half)
        out_specs=pl.BlockSpec((b_pad, HALF), lambda h, k: (0, h)),
        out_shape=jax.ShapeDtypeStruct((b_pad, HIDDEN), jnp.float32),
        scratch_shapes=[pltpu.VMEM((b_pad, HALF), jnp.float32)],
        compiler_params=pltpu.CompilerParams(
            dimension_semantics=("parallel", "arbitrary"),
            vmem_limit_bytes=vmem_limit),
        cost_estimate=pl.CostEstimate(
            flops=2 * b_pad * k_pad * HIDDEN, transcendentals=0,
            bytes_accessed=2 * _nbytes(x_p) + _nbytes(packed["w1"])
                           + b_pad * HIDDEN * 4),
    )(x_p, packed["w1"])

    # Kernel arg order: b1,g1,be1, w2,b2,g2,be2, w3,b3,g3,be3
    trunk_small = [packed[n] for n in ("b1", "g1", "beta1",
                                       "w2", "b2", "g2", "beta2",
                                       "w3", "b3", "g3", "beta3")]
    epi_flops = 2 * b_pad * 2 * HIDDEN * HIDDEN
    epi_bytes = (b_pad * HIDDEN * 4 + _nbytes(packed["w2"]) + _nbytes(packed["w3"]))

    if mode == "classifier":
        wc, bc = packed["wc"], packed["bc"]
        out = pl.pallas_call(
            _trunk_epilogue_cls_kernel,
            grid=(1,),
            in_specs=[resident(h1)] + [resident(p) for p in trunk_small]
                     + [resident(wc), resident(bc)],
            out_specs=pl.BlockSpec((b_pad, nc_pad), lambda i: (0, 0)),
            out_shape=jax.ShapeDtypeStruct((b_pad, nc_pad), jnp.float32),
            compiler_params=pltpu.CompilerParams(vmem_limit_bytes=vmem_limit),
            cost_estimate=pl.CostEstimate(
                flops=epi_flops + 2 * b_pad * HIDDEN * nc_pad,
                transcendentals=3 * b_pad,
                bytes_accessed=epi_bytes + _nbytes(wc) + b_pad * nc_pad * 4),
        )(h1, *trunk_small, wc, bc)
        return out[:B, :n_classes]

    if mode != "querier":
        raise ValueError(f"invalid mode: {mode}")
    if tau is None:
        raise ValueError("tau must be set for querier mode")

    # ---- 2) trunk epilogue: bias + LN + ReLU, layers 2/3 -> h [b_pad, 1024] --
    h = pl.pallas_call(
        _trunk_epilogue_h_kernel,
        grid=(1,),
        in_specs=[resident(h1)] + [resident(p) for p in trunk_small],
        out_specs=pl.BlockSpec((b_pad, HIDDEN), lambda i: (0, 0)),
        out_shape=jax.ShapeDtypeStruct((b_pad, HIDDEN), jnp.float32),
        compiler_params=pltpu.CompilerParams(vmem_limit_bytes=vmem_limit),
        cost_estimate=pl.CostEstimate(
            flops=epi_flops, transcendentals=3 * b_pad,
            bytes_accessed=epi_bytes + b_pad * HIDDEN * 4),
    )(h1, *trunk_small)

    # ---- 3) querier head: stream wq over N ("parallel"), lane-dense logits ---
    nn_tiles = n_pad // tn
    wq, bq = packed["wq"], packed["bq"]
    logits = pl.pallas_call(
        _query_logits_kernel,
        grid=(nn_tiles,),
        in_specs=[pl.BlockSpec((b_pad, HIDDEN), lambda j: (0, 0)),
                  pl.BlockSpec((HIDDEN, tn), lambda j: (0, j)),
                  pl.BlockSpec((1, tn), lambda j: (0, j))],
        out_specs=pl.BlockSpec((b_pad, tn), lambda j: (0, j)),
        out_shape=jax.ShapeDtypeStruct((b_pad, n_pad), jnp.float32),
        compiler_params=pltpu.CompilerParams(
            # Independent N tiles: lets v7x shard the wq stream over both TCs.
            dimension_semantics=("parallel",),
            vmem_limit_bytes=vmem_limit),
        cost_estimate=pl.CostEstimate(
            flops=2 * b_pad * HIDDEN * n_pad, transcendentals=0,
            bytes_accessed=_nbytes(wq) + b_pad * HIDDEN * 4 + b_pad * n_pad * 4),
    )(h, wq, bq)

    # ---- 4) mask + softmax(./tau) + straight-through hardargmax --------------
    has_mask = mask is not None
    select_kernel = _make_select_kernel(float(tau), n_queries, has_mask)
    select_args = [logits]
    select_in_specs = [pl.BlockSpec((b_pad, n_pad), lambda i: (0, 0))]
    if has_mask:
        mask_p = jnp.pad(mask.astype(jnp.float32),
                         ((0, b_pad - B), (0, n_pad - n_queries)))
        select_args.append(mask_p)
        select_in_specs.append(pl.BlockSpec((b_pad, n_pad), lambda i: (0, 0)))

    query = pl.pallas_call(
        select_kernel,
        grid=(1,),
        in_specs=select_in_specs,
        out_specs=pl.BlockSpec((b_pad, n_pad), lambda i: (0, 0)),
        out_shape=jax.ShapeDtypeStruct((b_pad, n_pad), jnp.float32),
        compiler_params=pltpu.CompilerParams(vmem_limit_bytes=vmem_limit),
        cost_estimate=pl.CostEstimate(
            flops=8 * b_pad * n_pad, transcendentals=b_pad * n_pad,
            bytes_accessed=(2 + int(has_mask)) * b_pad * n_pad * 4),
    )(*select_args)
    return query[:B, :n_queries]


# ---------------------------------------------------------------------------
# Pure-JAX references (same bf16 weights / f32 math) for correctness checks
# ---------------------------------------------------------------------------
def _reference_trunk(x, packed):
    def ln(h, g, b):
        m = jnp.mean(h, -1, keepdims=True)
        v = jnp.mean((h - m) ** 2, -1, keepdims=True)
        return (h - m) * jax.lax.rsqrt(v + LN_EPS) * g + b

    w1 = packed["w1"][:packed["input_dim"]]
    h = jnp.dot(x.astype(jnp.bfloat16), w1,
                preferred_element_type=jnp.float32) + packed["b1"]
    h = jnp.maximum(ln(h, packed["g1"], packed["beta1"]), 0.0)
    h = jnp.dot(h.astype(jnp.bfloat16), packed["w2"],
                preferred_element_type=jnp.float32) + packed["b2"]
    h = jnp.maximum(ln(h, packed["g2"], packed["beta2"]), 0.0)
    h = jnp.dot(h.astype(jnp.bfloat16), packed["w3"],
                preferred_element_type=jnp.float32) + packed["b3"]
    h = jnp.maximum(ln(h, packed["g3"], packed["beta3"]), 0.0)
    return h


def _reference_classifier(x, packed):
    h = _reference_trunk(x, packed)
    wc = packed["wc"][:, :packed["n_classes"]]
    bc = packed["bc"][:, :packed["n_classes"]]
    return jnp.dot(h.astype(jnp.bfloat16), wc,
                   preferred_element_type=jnp.float32) + bc


def _reference_query_logits(x, packed):
    h = _reference_trunk(x, packed)
    wq = packed["wq"][:, :packed["n_queries"]]
    bq = packed["bq"][:, :packed["n_queries"]]
    return jnp.dot(h.astype(jnp.bfloat16), wq,
                   preferred_element_type=jnp.float32) + bq


# ---------------------------------------------------------------------------
# Main
# ---------------------------------------------------------------------------
if __name__ == "__main__":
    # Small, self-consistent shapes (the real module uses input_dim=n_queries=16441,
    # which follows the same streamed code path).  max_stream_tile=128 forces
    # multi-tile K/N streaming so the accumulate/parallel grid paths are exercised.
    B, INPUT_DIM, N_QUERIES, N_CLASSES = 4, 256, 384, 2
    TAU = 0.5

    key = jax.random.PRNGKey(0)
    kx, kp, km = jax.random.split(key, 3)

    x = jax.random.normal(kx, (B, INPUT_DIM), jnp.float32)
    params = init_params(kp, INPUT_DIM, N_QUERIES, N_CLASSES)
    packed = pack_params(params, max_stream_tile=128)

    # Mask: 1 = already-asked query (filled with -inf before softmax).
    mask = (jax.random.uniform(km, (B, N_QUERIES)) < 0.25).astype(jnp.float32)

    # --- classifier mode ---
    logits_cls = jax.block_until_ready(
        fully_connected_shared_forward("classifier", x, packed))
    assert logits_cls.shape == (B, N_CLASSES)
    assert bool(jnp.all(jnp.isfinite(logits_cls)))
    ref_cls = _reference_classifier(x, packed)
    assert float(jnp.max(jnp.abs(logits_cls - ref_cls))) < 2e-2

    # --- querier mode (straight-through hardargmax -> forward output one-hot) ---
    query = jax.block_until_ready(
        fully_connected_shared_forward("querier", x, packed, mask=mask, tau=TAU))
    assert query.shape == (B, N_QUERIES)
    assert bool(jnp.all(jnp.isfinite(query)))
    # each row should (numerically) be a one-hot vector over unmasked queries
    row_sums = jnp.sum(query, axis=-1)
    assert bool(jnp.all(jnp.abs(row_sums - 1.0) < 1e-3))
    sel = jnp.argmax(query, axis=-1)
    # the selected query must not be a masked one
    assert bool(jnp.all(mask[jnp.arange(B), sel] == 0.0))
    # the selected query must be (up to tiny numerical slack) the masked argmax
    ref_logits = jnp.where(mask == 1.0, -jnp.inf, _reference_query_logits(x, packed))
    ref_max = jnp.max(ref_logits, axis=-1)
    assert bool(jnp.all(ref_logits[jnp.arange(B), sel] >= ref_max - 1e-2))

    print("KERNEL_OK")
</pallas_src>

<mosaic_0001>
module attributes {stable_mosaic.version = 11 : i64} {
  func.func @_trunk_matmul_kernel(%arg0: i32, %arg1: i32, %arg2: memref<16x128xbf16, #tpu.memory_space<vmem>>, %arg3: memref<128x512xbf16, #tpu.memory_space<vmem>>, %arg4: memref<16x512xf32, #tpu.memory_space<vmem>>, %arg5: memref<16x512xf32, #tpu.memory_space<vmem>>) attributes {dimension_semantics = [#tpu.dimension_semantics<parallel>, #tpu.dimension_semantics<arbitrary>], iteration_bounds = array<i64: 2, 2>, scalar_prefetch = 0 : i64, scratch_operands = 1 : i64, tpu.core_type = #tpu.core_type<tc>, window_params = [{transform_indices = @transform_0, window_bounds = array<i64: 16, 128>}, {transform_indices = @transform_1, window_bounds = array<i64: 128, 512>}, {transform_indices = @transform_2, window_bounds = array<i64: 16, 512>}]} {
    %c0_i32 = arith.constant 0 : i32
    %0 = arith.cmpi eq, %arg1, %c0_i32 : i32
    %1 = arith.extui %0 : i1 to i32
    %c0_i32_0 = arith.constant 0 : i32
    %2 = arith.cmpi ne, %1, %c0_i32_0 : i32
    scf.if %2 {
      %cst_9 = arith.constant 0.000000e+00 : f32
      %12 = vector.broadcast %cst_9 : f32 to vector<16x512xf32>
      %c0_10 = arith.constant 0 : index
      %c0_11 = arith.constant 0 : index
      %13 = vector.load %arg5[%c0_10, %c0_11] : memref<16x512xf32, #tpu.memory_space<vmem>>, vector<16x512xf32>
      tpu.vector_store %arg5[%c0_10, %c0_11], %12 {strides = array<i32>} : memref<16x512xf32, #tpu.memory_space<vmem>>, vector<16x512xf32>,
    } else {
    }
    %c0 = arith.constant 0 : index
    %c0_1 = arith.constant 0 : index
    %3 = vector.load %arg5[%c0, %c0_1] : memref<16x512xf32, #tpu.memory_space<vmem>>, vector<16x512xf32>
    %c0_2 = arith.constant 0 : index
    %c0_3 = arith.constant 0 : index
    %4 = vector.load %arg2[%c0_2, %c0_3] : memref<16x128xbf16, #tpu.memory_space<vmem>>, vector<16x128xbf16>
    %c0_4 = arith.constant 0 : index
    %c0_5 = arith.constant 0 : index
    %5 = vector.load %arg3[%c0_4, %c0_5] : memref<128x512xbf16, #tpu.memory_space<vmem>>, vector<128x512xbf16>
    %cst = arith.constant dense<0.000000e+00> : vector<16x512xf32>
    %6 = tpu.matmul %4, %5, %cst {dimension_numbers = #tpu.dot_dimension_numbers<[1], [0], [0], [1], [0, 0, 1, 1], [], []>} : vector<16x128xbf16>, vector<128x512xbf16>, vector<16x512xf32> -> vector<16x512xf32>
    %7 = arith.addf %3, %6 : vector<16x512xf32>
    %c0_6 = arith.constant 0 : index
    %c0_7 = arith.constant 0 : index
    %8 = vector.load %arg5[%c0_6, %c0_7] : memref<16x512xf32, #tpu.memory_space<vmem>>, vector<16x512xf32>
    tpu.vector_store %arg5[%c0_6, %c0_7], %7 {strides = array<i32>} : memref<16x512xf32, #tpu.memory_space<vmem>>, vector<16x512xf32>,
    %c1_i32 = arith.constant 1 : i32
    %9 = arith.cmpi eq, %arg1, %c1_i32 : i32
    %10 = arith.extui %9 : i1 to i32
    %c0_i32_8 = arith.constant 0 : i32
    %11 = arith.cmpi ne, %10, %c0_i32_8 : i32
    scf.if %11 {
      %c0_9 = arith.constant 0 : index
      %c0_10 = arith.constant 0 : index
      %12 = vector.load %arg5[%c0_9, %c0_10] : memref<16x512xf32, #tpu.memory_space<vmem>>, vector<16x512xf32>
      %c0_11 = arith.constant 0 : index
      %c0_12 = arith.constant 0 : index
      %13 = vector.load %arg4[%c0_11, %c0_12] : memref<16x512xf32, #tpu.memory_space<vmem>>, vector<16x512xf32>
      tpu.vector_store %arg4[%c0_11, %c0_12], %12 {strides = array<i32>} : memref<16x512xf32, #tpu.memory_space<vmem>>, vector<16x512xf32>,
    } else {
    }
    return
  }
  func.func @transform_0(%arg0: i32, %arg1: i32) -> (i32, i32) {
    %c0_i32 = arith.constant 0 : i32
    %c0_i32_0 = arith.constant 0 : i32
    return %c0_i32, %arg1 : i32, i32
  }
  func.func @transform_1(%arg0: i32, %arg1: i32) -> (i32, i32) {
    %c0_i32 = arith.constant 0 : i32
    return %arg1, %arg0 : i32, i32
  }
  func.func @transform_2(%arg0: i32, %arg1: i32) -> (i32, i32) {
    %c0_i32 = arith.constant 0 : i32
    %c0_i32_0 = arith.constant 0 : i32
    return %c0_i32, %arg0 : i32, i32
  }
}

</mosaic_0001>

<llo_original>
// kernel: tpu_custom_call.1
$region0: #{tpu_custom_call.1}
  #allocation0 [shape = 'u32[]', space=smem, size = 0x4, offset = 0x4, fixed_abs, tag = 'smem constant byte address 0x4 - core index']
  #allocation1 [shape = 'u32[72,128]{1,0:T(1,128)}', space=vmem, size = 0x9000, scoped, tag = 'internal scratch']
  #allocation2 [shape = 'f32[16,512]{1,0:T(8,128)}', space=vmem, size = 0x8000, scoped, tag = 'scratch operand']
  %s0 = inlined_call_operand.hbm [shape: bf16[16,256], index: 0, kind: input, shape index: {}]
  %s1 = inlined_call_operand.hbm [shape: bf16[256,1024], index: 1, kind: input, shape index: {}]
  %s2 = inlined_call_operand.hbm [shape: f32[16,1024], index: 2, kind: output, shape index: {}]
  %s3 = sld [smem:[#allocation0]]
  $region57: #{tpu_custom_call.1} parent=0
    _
  %s5 = ssub.s32 1, %s3
  %s6 = scalar_select 0, %s5, %s3
  $region1: #{tpu_custom_call.1} parent=0
    #allocation3 [shape = 'u8[8192]{0}', space=vmem, size = 0x2000, scoped, tag = 'input window, operand 0']
    #allocation4 [shape = 's32[2]{0}', space=sflag, size = 0x8, scoped, tag = 'scoped memory for tpu_custom_call.1']
    #allocation5 [shape = 's32[2]{0}', space=sflag, size = 0x8, scoped, tag = 'scoped memory for tpu_custom_call.1']
    #allocation6 [shape = 'u8[262144]{0}', space=vmem, size = 0x40000, scoped, tag = 'input window, operand 1']
    #allocation7 [shape = 's32[2]{0}', space=sflag, size = 0x8, scoped, tag = 'scoped memory for tpu_custom_call.1']
    #allocation8 [shape = 'u8[65536]{0}', space=vmem, size = 0x10000, scoped, tag = 'output window, operand 0']
    %7 = vsyncpa [#allocation4], 0
    %s8 = scalar_lea.sflag [#allocation4], 1
    %9 = vsyncpa %s8, 0
    %10 = vsyncpa [#allocation7], 0
    %s11 = scalar_lea.sflag [#allocation7], 1
    %12 = vsyncpa %s11, 0
    %13 = vsyncpa [#allocation5], 0
    %s14 = scalar_lea.sflag [#allocation5], 1
    %15 = vsyncpa %s14, 0
    loop: start=0, step=1, limit=6
    $region2: #{tpu_custom_call.1} parent=1 // loop_pre_header
      _
    $region3: #{tpu_custom_call.1} parent=1 // loop_header
      %s17 = sphi 0, %s21
      %p18 = scmp.ge.s32.totalorder %s17, 6
      %s24 = sphi 0, %s36
      %s25 = sphi 0, %s32
      %s26 = sphi 0, %s24
      %s27 = sphi 0, %s25
      %s28 = sphi 0, %s26
      %s29 = sphi 0, %s27
      %s39 = sphi 0, %s41
      %s42 = sphi 0, %s39
      %s43 = sphi 0, %s42
      %s59 = sphi 0, %s43
      %s67 = sphi 0, %s69
      %s70 = sphi 0, %s67
      %s71 = sphi 0, %s70
      %s87 = sphi 0, %s71
      %s93 = sphi 0, %s95
      %s96 = sphi 0, %s93
      %s97 = sphi 0, %s96
      %s113 = sphi 0, %s97
    $region4: #{tpu_custom_call.1} parent=1 // loop_header_branch
      %20 = sbr.rel (%p18) target = $region8
    $region5: #{tpu_custom_call.1} parent=1 // loop_body
      %s22 = ssub.s32 %s17, 1
      %s23 = ssub.s32 %s17, 2
      %s30 = sadd.s32 1, %s25
      %p31 = scmp.ge.s32.totalorder %s30, 2
      %s32 = scalar_select %p31, 0, %s30
      %s33 = sadd.s32 1, %s24
      %s34 = scalar_select %p31, %s33, %s24
      %p35 = scmp.ge.s32.totalorder %s34, 2
      %s36 = scalar_select %p35, 0, %s34
      %s37 = ssub.s32 %s25, %s32
      %p38 = scmp.eq.s32.totalorder %s37, 0
      %s40 = sadd.s32 %s39, 1
      %s41 = scalar_select %p38, %s39, %s40
      %p44 = pneg %p38
      %p45 = scmp.eq.s32.totalorder %s17, 3
      %p46 = por %p44, %p45
      %p47 = scmp.ne.s32.totalorder %s39, %s42
      %p48 = scmp.eq.s32.totalorder %s17, 0
      %p49 = por %p47, %p48
      %p50 = scmp.ne.s32.totalorder %s39, %s42
      %p51 = scmp.eq.s32.totalorder %s22, 3
      %p52 = por %p50, %p51
      %p53 = scmp.ne.s32.totalorder %s42, %s43
      %p54 = scmp.eq.s32.totalorder %s22, 0
      %p55 = por %p53, %p54
      %p56 = scmp.ne.s32.totalorder %s42, %s43
      %p57 = scmp.eq.s32.totalorder %s23, 3
      %p58 = por %p56, %p57
      %p60 = scmp.ne.s32.totalorder %s43, %s59
      %p61 = scmp.eq.s32.totalorder %s23, 0
      %p62 = por %p60, %p61
      %s63 = ssub.s32 %s25, %s32
      %s64 = ssub.s32 %s24, %s36
      %s65 = sor.u32 %s63, %s64
      %p66 = scmp.eq.s32.totalorder %s65, 0
      %s68 = sadd.s32 %s67, 1
      %s69 = scalar_select %p66, %s67, %s68
      %p72 = pneg %p66
      %p73 = scmp.eq.s32.totalorder %s17, 3
      %p74 = por %p72, %p73
      %p75 = scmp.ne.s32.totalorder %s67, %s70
      %p76 = scmp.eq.s32.totalorder %s17, 0
      %p77 = por %p75, %p76
      %p78 = scmp.ne.s32.totalorder %s67, %s70
      %p79 = scmp.eq.s32.totalorder %s22, 3
      %p80 = por %p78, %p79
      %p81 = scmp.ne.s32.totalorder %s70, %s71
      %p82 = scmp.eq.s32.totalorder %s22, 0
      %p83 = por %p81, %p82
      %p84 = scmp.ne.s32.totalorder %s70, %s71
      %p85 = scmp.eq.s32.totalorder %s23, 3
      %p86 = por %p84, %p85
      %p88 = scmp.ne.s32.totalorder %s71, %s87
      %p89 = scmp.eq.s32.totalorder %s23, 0
      %p90 = por %p88, %p89
      %s91 = ssub.s32 %s24, %s36
      %p92 = scmp.eq.s32.totalorder %s91, 0
      %s94 = sadd.s32 %s93, 1
      %s95 = scalar_select %p92, %s93, %s94
      %p98 = pneg %p92
      %p99 = scmp.eq.s32.totalorder %s17, 3
      %p100 = por %p98, %p99
      %p101 = scmp.ne.s32.totalorder %s93, %s96
      %p102 = scmp.eq.s32.totalorder %s17, 0
      %p103 = por %p101, %p102
      %p104 = scmp.ne.s32.totalorder %s93, %s96
      %p105 = scmp.eq.s32.totalorder %s22, 3
      %p106 = por %p104, %p105
      %p107 = scmp.ne.s32.totalorder %s96, %s97
      %p108 = scmp.eq.s32.totalorder %s22, 0
      %p109 = por %p107, %p108
      %p110 = scmp.ne.s32.totalorder %s96, %s97
      %p111 = scmp.eq.s32.totalorder %s23, 3
      %p112 = por %p110, %p111
      %p114 = scmp.ne.s32.totalorder %s97, %s113
      %p115 = scmp.eq.s32.totalorder %s23, 0
      %p116 = por %p114, %p115
      %p117 = scmp.le.s32.totalorder 1, %s17
      %p118 = scmp.lt.s32.totalorder %s17, 5
      %p119 = pnand %p117, %p118
      %p120 = pneg %p119
      // Predicated region
      $region9: #{tpu_custom_call.1} parent=5 // pred_check
        _
      $region10: #{tpu_custom_call.1} parent=5 // pred_check_branch
        %122 = sbr.rel (%p119) target = $region12
      $region11: #{tpu_custom_call.1} parent=5 // pred_region
        %s123 = ssub.s32 %s17, 1
      $region12: #{tpu_custom_call.1} parent=5 // pred_fallthru
        _
      %p124 = scmp.lt.s32.totalorder %s17, 4
      // Predicated region
      $region13: #{tpu_custom_call.1} parent=5 // pred_check
        %p125 = pneg %p124
      $region14: #{tpu_custom_call.1} parent=5 // pred_check_branch
        %127 = sbr.rel (%p125) target = $region16
      $region15: #{tpu_custom_call.1} parent=5 // pred_region
        // Predicated region
        $region17: #{tpu_custom_call.1} parent=15 // pred_check
          %p128 = pneg %p49
        $region18: #{tpu_custom_call.1} parent=15 // pred_check_branch
          %130 = sbr.rel (%p128) target = $region20
        $region19: #{tpu_custom_call.1} parent=15 // pred_region
          %s131 = sand.u32 %s39, 1
          %s132 = scalar_lea.sflag [#allocation4], %s131
          %s133 = sand.u32 %s39, 1
          %s134 = smul.addr %s133, 8
          %s135 = scalar_lea.vmem [#allocation3], %s134
          %137 = vsyncadd %s132, 0
          %s138 = smul.addr %s25, 4
          %s139 = scalar_lea.hbm %s0, %s138
          %s140 = sshll.u32 %s139, 4
          %s141 = int_to_ptr.hbm [resolvable:$true] %s140
          %s142 = sshll.u32 %s135, 4
          %s143 = int_to_ptr.vmem [resolvable:$true] %s142
          %148 = dma.hbm_to_vmem [thread:$0]  %s141, 128, %s143, %s132, 128, 64, 4
        $region20: #{tpu_custom_call.1} parent=15 // pred_fallthru
          _
        // Predicated region
        $region21: #{tpu_custom_call.1} parent=15 // pred_check
          %p149 = pneg %p77
        $region22: #{tpu_custom_call.1} parent=15 // pred_check_branch
          %151 = sbr.rel (%p149) target = $region24
        $region23: #{tpu_custom_call.1} parent=15 // pred_region
          %s152 = sand.u32 %s67, 1
          %s153 = scalar_lea.sflag [#allocation7], %s152
          %s154 = sand.u32 %s67, 1
          %s155 = smul.addr %s154, 256
          %s156 = scalar_lea.vmem [#allocation6], %s155
          %s157 = smul.u32 16, %s25
          %s158 = smul.u32 4, %s24
          %160 = vsyncadd %s153, 0
          %s161 = smul.addr %s157, 8
          %s162 = sadd.s32 %s158, %s161
          %s163 = smul.addr %s162, 4
          %s164 = scalar_lea.hbm %s1, %s163
          %s165 = sshll.u32 %s164, 4
          %s166 = int_to_ptr.hbm [resolvable:$true] %s165
          %s167 = sshll.u32 %s156, 4
          %s168 = int_to_ptr.vmem [resolvable:$true] %s167
          %173 = dma.hbm_to_vmem [thread:$0]  %s166, 4096, %s168, %s153, 512, 256, 16
        $region24: #{tpu_custom_call.1} parent=15 // pred_fallthru
          _
      $region16: #{tpu_custom_call.1} parent=5 // pred_fallthru
        _
      %p174 = scmp.le.s32.totalorder 1, %s17
      %p175 = scmp.lt.s32.totalorder %s17, 5
      %p176 = pnand %p174, %p175
      %p177 = pneg %p176
      // Predicated region
      $region25: #{tpu_custom_call.1} parent=5 // pred_check
        _
      $region26: #{tpu_custom_call.1} parent=5 // pred_check_branch
        %179 = sbr.rel (%p176) target = $region28
      $region27: #{tpu_custom_call.1} parent=5 // pred_region
        %s180 = ssub.s32 %s17, 1
        %s181 = sand.u32 %s42, 1
        %s182 = scalar_lea.sflag [#allocation4], %s181
        %s183 = sand.u32 %s42, 1
        %s184 = smul.addr %s183, 8
        %s185 = scalar_lea.vmem [#allocation3], %s184
        // Predicated region
        $region29: #{tpu_custom_call.1} parent=27 // pred_check
          %p186 = pneg %p55
        $region30: #{tpu_custom_call.1} parent=27 // pred_check_branch
          %188 = sbr.rel (%p186) target = $region32
        $region31: #{tpu_custom_call.1} parent=27 // pred_region
          %190 = dma.done %s182, 128
        $region32: #{tpu_custom_call.1} parent=27 // pred_fallthru
          _
        %s191 = sand.u32 %s70, 1
        %s192 = scalar_lea.sflag [#allocation7], %s191
        %s193 = sand.u32 %s70, 1
        %s194 = smul.addr %s193, 256
        %s195 = scalar_lea.vmem [#allocation6], %s194
        // Predicated region
        $region33: #{tpu_custom_call.1} parent=27 // pred_check
          %p196 = pneg %p83
        $region34: #{tpu_custom_call.1} parent=27 // pred_check_branch
          %198 = sbr.rel (%p196) target = $region36
        $region35: #{tpu_custom_call.1} parent=27 // pred_region
          %200 = dma.done %s192, 4096
        $region36: #{tpu_custom_call.1} parent=27 // pred_fallthru
          _
        %s201 = sand.u32 %s42, 1
        %s202 = scalar_lea.sflag [#allocation4], %s201
        %s203 = sand.u32 %s42, 1
        %s204 = smul.addr %s203, 8
        %s205 = scalar_lea.vmem [#allocation3], %s204
        %p206 = pneg %p55
        %p207 = pneg %p52
        %s208 = sand.u32 %s70, 1
        %s209 = scalar_lea.sflag [#allocation7], %s208
        %s210 = sand.u32 %s70, 1
        %s211 = smul.addr %s210, 256
        %s212 = scalar_lea.vmem [#allocation6], %s211
        %p213 = pneg %p83
        %p214 = pneg %p80
        %p215 = pneg %p109
        %p216 = pneg %p106
        %s217 = sand.u32 %s96, 1
        %s218 = scalar_lea.sflag [#allocation5], %s217
        %s219 = sand.u32 %s96, 1
        %s220 = smul.addr %s219, 64
        %s221 = scalar_lea.vmem [#allocation8], %s220
        %s222 = smul.u32 16, %s27
        %s223 = smul.u32 4, %s26
        %s224 = smul.u32 4, %s26
        %p225 = scmp.eq.s32.totalorder %s27, 0
        // Predicated region
        $region37: #{tpu_custom_call.1} parent=27 // pred_check
          %p226 = pneg %p225
        $region38: #{tpu_custom_call.1} parent=27 // pred_check_branch
          %228 = sbr.rel (%p226) target = $region40
        $region39: #{tpu_custom_call.1} parent=27 // pred_region
          %229 = vst [vmem:[#allocation2] sm:$0xff] 0.0
          %230 = vst [vmem:[#allocation2 + $0x8] sm:$0xff] 0.0
          %231 = vst [vmem:[#allocation2 + $0x10] sm:$0xff] 0.0
          %232 = vst [vmem:[#allocation2 + $0x18] sm:$0xff] 0.0
          %233 = vst [vmem:[#allocation2 + $0x20] sm:$0xff] 0.0
          %234 = vst [vmem:[#allocation2 + $0x28] sm:$0xff] 0.0
          %235 = vst [vmem:[#allocation2 + $0x30] sm:$0xff] 0.0
          %236 = vst [vmem:[#allocation2 + $0x38] sm:$0xff] 0.0
        $region40: #{tpu_custom_call.1} parent=27 // pred_fallthru
          _
        %v237 = vld [vmem:[#allocation2] sm:$0xff]
        %v238 = vld [vmem:[#allocation2 + $0x8] sm:$0xff]
        %v239 = vld [vmem:[#allocation2 + $0x10] sm:$0xff]
        %v240 = vld [vmem:[#allocation2 + $0x18] sm:$0xff]
        %v241 = vld [vmem:[#allocation2 + $0x20] sm:$0xff]
        %v242 = vld [vmem:[#allocation2 + $0x28] sm:$0xff]
        %v243 = vld [vmem:[#allocation2 + $0x30] sm:$0xff]
        %v244 = vld [vmem:[#allocation2 + $0x38] sm:$0xff]
        %v245 = vld [vmem:[%s185] sm:$0xf]
        %v246 = vld [vmem:[%s185 + $0x4] sm:$0xf]
        %v247 = vld [vmem:[%s195] sm:$0xff]
        %v248 = vld [vmem:[%s195 + $0x8] sm:$0xff]
        %v249 = vld [vmem:[%s195 + $0x10] sm:$0xff]
        %v250 = vld [vmem:[%s195 + $0x18] sm:$0xff]
        %v251 = vld [vmem:[%s195 + $0x20] sm:$0xff]
        %v252 = vld [vmem:[%s195 + $0x28] sm:$0xff]
        %v253 = vld [vmem:[%s195 + $0x30] sm:$0xff]
        %v254 = vld [vmem:[%s195 + $0x38] sm:$0xff]
        %v255 = vld [vmem:[%s195 + $0x40] sm:$0xff]
        %v256 = vld [vmem:[%s195 + $0x48] sm:$0xff]
        %v257 = vld [vmem:[%s195 + $0x50] sm:$0xff]
        %v258 = vld [vmem:[%s195 + $0x58] sm:$0xff]
        %v259 = vld [vmem:[%s195 + $0x60] sm:$0xff]
        %v260 = vld [vmem:[%s195 + $0x68] sm:$0xff]
        %v261 = vld [vmem:[%s195 + $0x70] sm:$0xff]
        %v262 = vld [vmem:[%s195 + $0x78] sm:$0xff]
        %v263 = vld [vmem:[%s195 + $0x80] sm:$0xff]
        %v264 = vld [vmem:[%s195 + $0x88] sm:$0xff]
        %v265 = vld [vmem:[%s195 + $0x90] sm:$0xff]
        %v266 = vld [vmem:[%s195 + $0x98] sm:$0xff]
        %v267 = vld [vmem:[%s195 + $0xa0] sm:$0xff]
        %v268 = vld [vmem:[%s195 + $0xa8] sm:$0xff]
        %v269 = vld [vmem:[%s195 + $0xb0] sm:$0xff]
        %v270 = vld [vmem:[%s195 + $0xb8] sm:$0xff]
        %v271 = vld [vmem:[%s195 + $0xc0] sm:$0xff]
        %v272 = vld [vmem:[%s195 + $0xc8] sm:$0xff]
        %v273 = vld [vmem:[%s195 + $0xd0] sm:$0xff]
        %v274 = vld [vmem:[%s195 + $0xd8] sm:$0xff]
        %v275 = vld [vmem:[%s195 + $0xe0] sm:$0xff]
        %v276 = vld [vmem:[%s195 + $0xe8] sm:$0xff]
        %v277 = vld [vmem:[%s195 + $0xf0] sm:$0xff]
        %v278 = vld [vmem:[%s195 + $0xf8] sm:$0xff]
        %v281 = vunpack.c.l.b16 %v245
        %v282 = vunpack.c.l.b16 %v246
        %v283 = vpack.c.b16 %v282, %v281
        %v317 = vunpack.c.l.b16 %v247
        %v318 = vunpack.c.h.b16 %v247
        %v319 = vunpack.c.l.b16 %v248
        %v320 = vunpack.c.h.b16 %v248
        %v321 = vunpack.c.l.b16 %v249
        %v322 = vunpack.c.h.b16 %v249
        %v323 = vunpack.c.l.b16 %v250
        %v324 = vunpack.c.h.b16 %v250
        %v325 = vunpack.c.l.b16 %v251
        %v326 = vunpack.c.h.b16 %v251
        %v327 = vunpack.c.l.b16 %v252
        %v328 = vunpack.c.h.b16 %v252
        %v329 = vunpack.c.l.b16 %v253
        %v330 = vunpack.c.h.b16 %v253
        %v331 = vunpack.c.l.b16 %v254
        %v332 = vunpack.c.h.b16 %v254
        %v333 = vunpack.c.l.b16 %v255
        %v334 = vunpack.c.h.b16 %v255
        %v335 = vunpack.c.l.b16 %v256
        %v336 = vunpack.c.h.b16 %v256
        %v337 = vunpack.c.l.b16 %v257
        %v338 = vunpack.c.h.b16 %v257
        %v339 = vunpack.c.l.b16 %v258
        %v340 = vunpack.c.h.b16 %v258
        %v341 = vunpack.c.l.b16 %v259
        %v342 = vunpack.c.h.b16 %v259
        %v343 = vunpack.c.l.b16 %v260
        %v344 = vunpack.c.h.b16 %v260
        %v345 = vunpack.c.l.b16 %v261
        %v346 = vunpack.c.h.b16 %v261
        %v347 = vunpack.c.l.b16 %v262
        %v348 = vunpack.c.h.b16 %v262
        %v349 = vunpack.c.l.b16 %v263
        %v350 = vunpack.c.h.b16 %v263
        %v351 = vunpack.c.l.b16 %v264
        %v352 = vunpack.c.h.b16 %v264
        %v353 = vunpack.c.l.b16 %v265
        %v354 = vunpack.c.h.b16 %v265
        %v355 = vunpack.c.l.b16 %v266
        %v356 = vunpack.c.h.b16 %v266
        %v357 = vunpack.c.l.b16 %v267
        %v358 = vunpack.c.h.b16 %v267
        %v359 = vunpack.c.l.b16 %v268
        %v360 = vunpack.c.h.b16 %v268
        %v361 = vunpack.c.l.b16 %v269
        %v362 = vunpack.c.h.b16 %v269
        %v363 = vunpack.c.l.b16 %v270
        %v364 = vunpack.c.h.b16 %v270
        %v365 = vunpack.c.l.b16 %v271
        %v366 = vunpack.c.h.b16 %v271
        %v367 = vunpack.c.l.b16 %v272
        %v368 = vunpack.c.h.b16 %v272
        %v369 = vunpack.c.l.b16 %v273
        %v370 = vunpack.c.h.b16 %v273
        %v371 = vunpack.c.l.b16 %v274
        %v372 = vunpack.c.h.b16 %v274
        %v373 = vunpack.c.l.b16 %v275
        %v374 = vunpack.c.h.b16 %v275
        %v375 = vunpack.c.l.b16 %v276
        %v376 = vunpack.c.h.b16 %v276
        %v377 = vunpack.c.l.b16 %v277
        %v378 = vunpack.c.h.b16 %v277
        %v379 = vunpack.c.l.b16 %v278
        %v380 = vunpack.c.h.b16 %v278
        %v381 = vpack.c.b16 %v321, %v317
        %v382 = vpack.c.b16 %v322, %v318
        %v383 = vpack.c.b16 %v323, %v319
        %v384 = vpack.c.b16 %v324, %v320
        %v385 = vpack.c.b16 %v329, %v325
        %v386 = vpack.c.b16 %v330, %v326
        %v387 = vpack.c.b16 %v331, %v327
        %v388 = vpack.c.b16 %v332, %v328
        %v389 = vpack.c.b16 %v337, %v333
        %v390 = vpack.c.b16 %v338, %v334
        %v391 = vpack.c.b16 %v339, %v335
        %v392 = vpack.c.b16 %v340, %v336
        %v393 = vpack.c.b16 %v345, %v341
        %v394 = vpack.c.b16 %v346, %v342
        %v395 = vpack.c.b16 %v347, %v343
        %v396 = vpack.c.b16 %v348, %v344
        %v397 = vpack.c.b16 %v353, %v349
        %v398 = vpack.c.b16 %v354, %v350
        %v399 = vpack.c.b16 %v355, %v351
        %v400 = vpack.c.b16 %v356, %v352
        %v401 = vpack.c.b16 %v361, %v357
        %v402 = vpack.c.b16 %v362, %v358
        %v403 = vpack.c.b16 %v363, %v359
        %v404 = vpack.c.b16 %v364, %v360
        %v405 = vpack.c.b16 %v369, %v365
        %v406 = vpack.c.b16 %v370, %v366
        %v407 = vpack.c.b16 %v371, %v367
        %v408 = vpack.c.b16 %v372, %v368
        %v409 = vpack.c.b16 %v377, %v373
        %v410 = vpack.c.b16 %v378, %v374
        %v411 = vpack.c.b16 %v379, %v375
        %v412 = vpack.c.b16 %v380, %v376
        %445 = vmatpush.bf16.msra.mxu0 %v409
        %446 = vmatpush.bf16.msra.mxu0 %v405
        %447 = vmatpush.bf16.msra.mxu0 %v401
        %448 = vmatpush.bf16.msra.mxu0 %v397
        %449 = vmatpush.bf16.msra.mxu0 %v393
        %450 = vmatpush.bf16.msra.mxu0 %v389
        %451 = vmatpush.bf16.msra.mxu0 %v385
        %452 = vmatpush.bf16.msra.mxu0 %v381
        %453 = vmatmul.bf16.gmra.mxu0 %v283
        %v454 = vpop.f32.mrf.mxu0
        %v455 = vadd.f32 0.0, %v454
        %v456 = vpop.f32.mrf.mxu0
        %v457 = vadd.f32 0.0, %v456
        %458 = vdwg.mxu0
        %459 = vmatpush.bf16.msra.mxu0 %v410
        %460 = vmatpush.bf16.msra.mxu0 %v406
        %461 = vmatpush.bf16.msra.mxu0 %v402
        %462 = vmatpush.bf16.msra.mxu0 %v398
        %463 = vmatpush.bf16.msra.mxu0 %v394
        %464 = vmatpush.bf16.msra.mxu0 %v390
        %465 = vmatpush.bf16.msra.mxu0 %v386
        %466 = vmatpush.bf16.msra.mxu0 %v382
        %467 = vmatmul.bf16.gmra.mxu0 %v283
        %v468 = vpop.f32.mrf.mxu0
        %v469 = vadd.f32 0.0, %v468
        %v470 = vpop.f32.mrf.mxu0
        %v471 = vadd.f32 0.0, %v470
        %472 = vdwg.mxu0
        %473 = vmatpush.bf16.msra.mxu0 %v411
        %474 = vmatpush.bf16.msra.mxu0 %v407
        %475 = vmatpush.bf16.msra.mxu0 %v403
        %476 = vmatpush.bf16.msra.mxu0 %v399
        %477 = vmatpush.bf16.msra.mxu0 %v395
        %478 = vmatpush.bf16.msra.mxu0 %v391
        %479 = vmatpush.bf16.msra.mxu0 %v387
        %480 = vmatpush.bf16.msra.mxu0 %v383
        %481 = vmatmul.bf16.gmra.mxu0 %v283
        %v482 = vpop.f32.mrf.mxu0
        %v483 = vadd.f32 0.0, %v482
        %v484 = vpop.f32.mrf.mxu0
        %v485 = vadd.f32 0.0, %v484
        %486 = vdwg.mxu0
        %487 = vmatpush.bf16.msra.mxu0 %v412
        %488 = vmatpush.bf16.msra.mxu0 %v408
        %489 = vmatpush.bf16.msra.mxu0 %v404
        %490 = vmatpush.bf16.msra.mxu0 %v400
        %491 = vmatpush.bf16.msra.mxu0 %v396
        %492 = vmatpush.bf16.msra.mxu0 %v392
        %493 = vmatpush.bf16.msra.mxu0 %v388
        %494 = vmatpush.bf16.msra.mxu0 %v384
        %495 = vmatmul.bf16.gmra.mxu0 %v283
        %v496 = vpop.f32.mrf.mxu0
        %v497 = vadd.f32 0.0, %v496
        %v498 = vpop.f32.mrf.mxu0
        %v499 = vadd.f32 0.0, %v498
        %500 = vdwg.mxu0
        %v501 = vadd.f32 %v237, %v455
        %v502 = vadd.f32 %v238, %v469
        %v503 = vadd.f32 %v239, %v483
        %v504 = vadd.f32 %v240, %v497
        %v505 = vadd.f32 %v241, %v457
        %v506 = vadd.f32 %v242, %v471
        %v507 = vadd.f32 %v243, %v485
        %v508 = vadd.f32 %v244, %v499
        %509 = vst [vmem:[#allocation2] sm:$0xff] %v501
        %510 = vst [vmem:[#allocation2 + $0x8] sm:$0xff] %v502
        %511 = vst [vmem:[#allocation2 + $0x10] sm:$0xff] %v503
        %512 = vst [vmem:[#allocation2 + $0x18] sm:$0xff] %v504
        %513 = vst [vmem:[#allocation2 + $0x20] sm:$0xff] %v505
        %514 = vst [vmem:[#allocation2 + $0x28] sm:$0xff] %v506
        %515 = vst [vmem:[#allocation2 + $0x30] sm:$0xff] %v507
        %516 = vst [vmem:[#allocation2 + $0x38] sm:$0xff] %v508
        %p517 = scmp.eq.s32.totalorder %s27, 1
        // Predicated region
        $region41: #{tpu_custom_call.1} parent=27 // pred_check
          %p518 = pneg %p517
        $region42: #{tpu_custom_call.1} parent=27 // pred_check_branch
          %520 = sbr.rel (%p518) target = $region44
        $region43: #{tpu_custom_call.1} parent=27 // pred_region
          %v521 = vld [vmem:[#allocation2] sm:$0xff]
          %v522 = vld [vmem:[#allocation2 + $0x8] sm:$0xff]
          %v523 = vld [vmem:[#allocation2 + $0x10] sm:$0xff]
          %v524 = vld [vmem:[#allocation2 + $0x18] sm:$0xff]
          %v525 = vld [vmem:[#allocation2 + $0x20] sm:$0xff]
          %v526 = vld [vmem:[#allocation2 + $0x28] sm:$0xff]
          %v527 = vld [vmem:[#allocation2 + $0x30] sm:$0xff]
          %v528 = vld [vmem:[#allocation2 + $0x38] sm:$0xff]
          %529 = vst [vmem:[%s221] sm:$0xff] %v521
          %530 = vst [vmem:[%s221 + $0x8] sm:$0xff] %v522
          %531 = vst [vmem:[%s221 + $0x10] sm:$0xff] %v523
          %532 = vst [vmem:[%s221 + $0x18] sm:$0xff] %v524
          %533 = vst [vmem:[%s221 + $0x20] sm:$0xff] %v525
          %534 = vst [vmem:[%s221 + $0x28] sm:$0xff] %v526
          %535 = vst [vmem:[%s221 + $0x30] sm:$0xff] %v527
          %536 = vst [vmem:[%s221 + $0x38] sm:$0xff] %v528
        $region44: #{tpu_custom_call.1} parent=27 // pred_fallthru
          _
        %s537 = sand.u32 %s96, 1
        %s538 = scalar_lea.sflag [#allocation5], %s537
        %s539 = sand.u32 %s96, 1
        %s540 = smul.addr %s539, 64
        %s541 = scalar_lea.vmem [#allocation8], %s540
        // Predicated region
        $region45: #{tpu_custom_call.1} parent=27 // pred_check
          %p542 = pneg %p106
        $region46: #{tpu_custom_call.1} parent=27 // pred_check_branch
          %544 = sbr.rel (%p542) target = $region48
        $region47: #{tpu_custom_call.1} parent=27 // pred_region
          %s545 = smul.u32 4, %s26
          %547 = vsyncadd %s538, 0
          %s548 = smul.addr %s545, 8
          %s549 = scalar_lea.hbm %s2, %s548
          %s550 = sshll.u32 %s541, 4
          %s551 = int_to_ptr.vmem [resolvable:$true] %s550
          %s552 = sshll.u32 %s549, 4
          %s553 = int_to_ptr.hbm [resolvable:$true] %s552
          %558 = dma.vmem_to_hbm [thread:$0]  %s551, 1024, %s553, %s538, 512, 1024, 32
        $region48: #{tpu_custom_call.1} parent=27 // pred_fallthru
          _
      $region28: #{tpu_custom_call.1} parent=5 // pred_fallthru
        _
      %p559 = scmp.le.s32.totalorder 2, %s17
      // Predicated region
      $region49: #{tpu_custom_call.1} parent=5 // pred_check
        %p560 = pneg %p559
      $region50: #{tpu_custom_call.1} parent=5 // pred_check_branch
        %562 = sbr.rel (%p560) target = $region52
      $region51: #{tpu_custom_call.1} parent=5 // pred_region
        %s563 = ssub.s32 %s17, 2
        // Predicated region
        $region53: #{tpu_custom_call.1} parent=51 // pred_check
          %p564 = pneg %p112
        $region54: #{tpu_custom_call.1} parent=51 // pred_check_branch
          %566 = sbr.rel (%p564) target = $region56
        $region55: #{tpu_custom_call.1} parent=51 // pred_region
          %s567 = sand.u32 %s97, 1
          %s568 = scalar_lea.sflag [#allocation5], %s567
          %s569 = sand.u32 %s97, 1
          %s570 = smul.addr %s569, 64
          %s571 = scalar_lea.vmem [#allocation8], %s570
          %573 = dma.done %s568, 1024
        $region56: #{tpu_custom_call.1} parent=51 // pred_fallthru
          _
      $region52: #{tpu_custom_call.1} parent=5 // pred_fallthru
        _
    $region6: #{tpu_custom_call.1} parent=1 // loop_footer
      %s21 = sadd.s32 1, %s17
    $region7: #{tpu_custom_call.1} parent=1 // loop_footer_branch
      %16 = sbr.rel target = $region3
    $region8: #{tpu_custom_call.1} parent=1 // loop_exit
      _
    %574 = vsyncpa [#allocation4], 1
    %s575 = scalar_lea.sflag [#allocation4], 1
    %576 = vsyncpa %s575, 1
    %577 = vsyncpa [#allocation7], 1
    %s578 = scalar_lea.sflag [#allocation7], 1
    %579 = vsyncpa %s578, 1
    %580 = vsyncpa [#allocation5], 1
    %s581 = scalar_lea.sflag [#allocation5], 1
    %582 = vsyncpa %s581, 1

</llo_original>
